<compile_context>
chip_gen: v5e
topology: v5e:2x2
jax: 0.10.0
libtpu: 0.0.40
codegen_flags: <defaults>
</compile_context>

<pallas_src>
import functools
import math

import jax
import jax.numpy as jnp
from jax.experimental import pallas as pl
from jax.experimental.pallas import tpu as pltpu

IN_DIM = 32        # generator input features
HIDDEN = 64        # hidden features (LayerNorm width)
ROW_PAD = 8        # sublane count -> every activation spans full sublanes
HIDDEN_PAD = 128   # hidden padded to one lane width (one f32 vreg per activation)
OUT_PAD = 128      # output lanes padded to one lane width (unmasked vst)


# ----------------------------- Pallas kernel --------------------------------
def _k_generator_kernel(offset_ref, x_ref, w1_ref, g1_ref, b1_ref, w2_ref, out_ref,
                        *, eps, inv_hidden):
    # offset: (1,) SMEM   x: (8, 32)   w1: (32, 128)   g1/b1: (1, 128)
    # w2: (128, 128)      out: (8, 128)
    # All padded lanes/rows carry zeros and are neutralized by zero-padded gamma / w2.
    x = x_ref[...]

    # Linear(32 -> 64, bias=False)   [MXU]; columns 64..127 of w1 are zero.
    h = jnp.dot(x, w1_ref[...], preferred_element_type=jnp.float32)

    # LayerNorm over the 64 valid lanes.  The two reductions are independent (overlap in the XLU);
    # padded lanes are exactly zero so they contribute nothing to either sum.
    sum_h = jnp.sum(h, axis=-1, keepdims=True)
    sum_h2 = jnp.sum(h * h, axis=-1, keepdims=True)
    mean = sum_h * inv_hidden
    var = jnp.maximum(sum_h2 * inv_hidden - mean * mean, 0.0)
    h = (h - mean) * jax.lax.rsqrt(var + eps)
    # gamma is zero in padded lanes -> padded lanes forced back to exactly 0 before the 2nd matmul.
    h = h * g1_ref[...] + b1_ref[...]

    # ReLU                           [VPU]
    h = jnp.maximum(h, 0.0)

    # Linear(64 -> L, bias=False)    [MXU]; rows 64..127 and cols L..127 of w2 are zero.
    y = jnp.dot(h, w2_ref[...], preferred_element_type=jnp.float32)

    # sigmoid(y + offset)            [EUP]; offset read from SMEM (no recompile when it changes).
    out_ref[...] = jax.nn.sigmoid(y + offset_ref[0])


# ----------------------------- host-side wrapper -----------------------------
@functools.partial(jax.jit, static_argnames=("num_layers", "eps"))
def k_generator_forward(x, w1_p, gamma1_p, beta1_p, w2_p, offset, *, num_layers, eps=1e-5):
    """Runs the k_generator MLP in a single Pallas call.

    x:        (1, 32)   float32   (row-padded to (8, 32) here)
    w1_p:     (32, 128) float32   zero-padded (in, out) weight
    gamma1_p: (1, 128)  float32   zero-padded LayerNorm weight
    beta1_p:  (1, 128)  float32   zero-padded LayerNorm bias
    w2_p:     (128,128) float32   zero-padded (in, out) weight
    offset:   scalar              sigmoid offset (SMEM scalar, not baked in)
    returns sigmoid(fc(x) + offset).squeeze()  -> shape (num_layers,) (scalar if num_layers == 1)
    """
    x = x.astype(jnp.float32)
    x_p = jnp.zeros((ROW_PAD, IN_DIM), jnp.float32).at[: x.shape[0], :].set(x)
    offset_arr = jnp.reshape(jnp.asarray(offset, jnp.float32), (1,))

    kernel = functools.partial(_k_generator_kernel, eps=float(eps), inv_hidden=1.0 / HIDDEN)
    vmem = pl.BlockSpec(memory_space=pltpu.MemorySpace.VMEM)
    smem = pl.BlockSpec(memory_space=pltpu.MemorySpace.SMEM)

    out = pl.pallas_call(
        kernel,
        out_shape=jax.ShapeDtypeStruct((ROW_PAD, OUT_PAD), jnp.float32),
        in_specs=[smem, vmem, vmem, vmem, vmem, vmem],
        out_specs=vmem,
    )(offset_arr, x_p, w1_p, gamma1_p, beta1_p, w2_p)

    # Slice back to the logical (1, num_layers) result; match torch's .squeeze(), which squeezes
    # ALL size-1 dims (num_layers == 1 -> 0-d scalar).
    return jnp.squeeze(out[0:1, 0:num_layers])


# ----------------------------- Module wrapper --------------------------------
class KGeneratorPallas:
    def __init__(self, structure, soft_range=0.05, offset=3.0, key=jax.random.PRNGKey(0)):
        self.structure = list(structure)
        self.num_layers = len(structure)
        self.soft_range = soft_range
        self.offset = offset

        k_in, k_w1, k_w2 = jax.random.split(key, 3)
        # nn.Parameter(torch.randn(1, 32))
        self.inputs = jax.random.normal(k_in, (1, IN_DIM), dtype=jnp.float32)
        # Linear(32, 64, bias=False), stored (in, out).  (Kaiming-uniform-ish; not bit-faithful
        # to torch's default init — load real weights for checkpoint parity.)
        b1 = 1.0 / math.sqrt(IN_DIM)
        self.w1 = jax.random.uniform(k_w1, (IN_DIM, HIDDEN), jnp.float32, -b1, b1)
        # LayerNorm([64]) defaults.
        self.gamma1 = jnp.ones((HIDDEN,), jnp.float32)
        self.beta1 = jnp.zeros((HIDDEN,), jnp.float32)
        # Linear(64, num_layers, bias=False), stored (in, out).
        b2 = 1.0 / math.sqrt(HIDDEN)
        self.w2 = jax.random.uniform(k_w2, (HIDDEN, self.num_layers), jnp.float32, -b2, b2)
        # self.ln = LayerNorm([num_layers]) exists in the torch __init__ but is unused in forward.

        # Lane-dense, vreg-aligned padded copies used by the Pallas kernel (built ONCE).
        self.w1_p = jnp.zeros((IN_DIM, HIDDEN_PAD), jnp.float32).at[:, :HIDDEN].set(self.w1)
        self.gamma1_p = jnp.zeros((1, HIDDEN_PAD), jnp.float32).at[0, :HIDDEN].set(self.gamma1)
        self.beta1_p = jnp.zeros((1, HIDDEN_PAD), jnp.float32).at[0, :HIDDEN].set(self.beta1)
        self.w2_p = (jnp.zeros((HIDDEN_PAD, OUT_PAD), jnp.float32)
                     .at[:HIDDEN, : self.num_layers].set(self.w2))

    def __call__(self, given_inputs=None):
        x = self.inputs if given_inputs is None else given_inputs
        outputs = k_generator_forward(
            x, self.w1_p, self.gamma1_p, self.beta1_p, self.w2_p, self.offset,
            num_layers=self.num_layers)
        # TODO(synk): `k_gradient.apply` is an external custom autograd Function not defined in the
        # provided source, so the per-layer masks cannot be reproduced faithfully; returning None.
        masks = None
        return masks, outputs


# ----------------------------- pure-JAX reference ----------------------------
def _ref_forward(x, w1, gamma, beta, w2, offset, eps=1e-5):
    h = x @ w1
    mean = jnp.mean(h, axis=-1, keepdims=True)
    var = jnp.mean((h - mean) ** 2, axis=-1, keepdims=True)
    h = (h - mean) / jnp.sqrt(var + eps) * gamma + beta
    h = jnp.maximum(h, 0.0)
    y = h @ w2
    return jnp.squeeze(jax.nn.sigmoid(y + offset))


# ----------------------------- demo / smoke test ------------------------------
if __name__ == "__main__":
    structure = [16, 16, 32, 32, 64, 64, 128, 128]  # num_layers = 8
    model = KGeneratorPallas(structure, soft_range=0.05, offset=3.0,
                             key=jax.random.PRNGKey(0))

    # Default path: the module's own learned input (given_inputs=None).
    masks, outputs = model()
    outputs = jax.block_until_ready(outputs)

    # given_inputs path with a deterministic external input.
    x_ext = jax.random.normal(jax.random.PRNGKey(1), (1, IN_DIM), dtype=jnp.float32)
    _, outputs_ext = model(x_ext)
    outputs_ext = jax.block_until_ready(outputs_ext)

    # Pure-JAX reference against the unpadded parameters.
    ref = _ref_forward(model.inputs, model.w1, model.gamma1, model.beta1, model.w2, model.offset)
    ref_ext = _ref_forward(x_ext, model.w1, model.gamma1, model.beta1, model.w2, model.offset)

    assert outputs.shape == (len(structure),)
    assert outputs_ext.shape == (len(structure),)
    assert bool(jnp.all((outputs >= 0.0) & (outputs <= 1.0)))
    assert bool(jnp.allclose(outputs, ref, atol=1e-5, rtol=1e-5))
    assert bool(jnp.allclose(outputs_ext, ref_ext, atol=1e-5, rtol=1e-5))

    print("KERNEL_OK")
</pallas_src>

<mosaic_0001>
module attributes {stable_mosaic.version = 11 : i64} {
  func.func @_k_generator_kernel(%arg0: memref<1xf32, #tpu.memory_space<smem>>, %arg1: memref<8x32xf32, #tpu.memory_space<vmem>>, %arg2: memref<32x128xf32, #tpu.memory_space<vmem>>, %arg3: memref<1x128xf32, #tpu.memory_space<vmem>>, %arg4: memref<1x128xf32, #tpu.memory_space<vmem>>, %arg5: memref<128x128xf32, #tpu.memory_space<vmem>>, %arg6: memref<8x128xf32, #tpu.memory_space<vmem>>) attributes {dimension_semantics = [], scalar_prefetch = 0 : i64, scratch_operands = 0 : i64, tpu.core_type = #tpu.core_type<tc>} {
    %c0 = arith.constant 0 : index
    %c0_0 = arith.constant 0 : index
    %0 = vector.load %arg1[%c0, %c0_0] : memref<8x32xf32, #tpu.memory_space<vmem>>, vector<8x32xf32>
    %c0_1 = arith.constant 0 : index
    %c0_2 = arith.constant 0 : index
    %1 = vector.load %arg2[%c0_1, %c0_2] : memref<32x128xf32, #tpu.memory_space<vmem>>, vector<32x128xf32>
    %cst = arith.constant dense<0.000000e+00> : vector<8x128xf32>
    %2 = tpu.matmul %0, %1, %cst {dimension_numbers = #tpu.dot_dimension_numbers<[1], [0], [0], [1], [0, 0, 1, 1], [], []>} : vector<8x32xf32>, vector<32x128xf32>, vector<8x128xf32> -> vector<8x128xf32>
    %cst_3 = arith.constant dense<0.000000e+00> : vector<8xf32>
    %3 = vector.multi_reduction <add>, %2, %cst_3 [1] : vector<8x128xf32> to vector<8xf32>
    %4 = vector.shape_cast %3 : vector<8xf32> to vector<8x1xf32>
    %5 = arith.mulf %2, %2 : vector<8x128xf32>
    %cst_4 = arith.constant dense<0.000000e+00> : vector<8xf32>
    %6 = vector.multi_reduction <add>, %5, %cst_4 [1] : vector<8x128xf32> to vector<8xf32>
    %7 = vector.shape_cast %6 : vector<8xf32> to vector<8x1xf32>
    %cst_5 = arith.constant 1.562500e-02 : f32
    %8 = vector.broadcast %cst_5 : f32 to vector<8x1xf32>
    %9 = arith.mulf %4, %8 : vector<8x1xf32>
    %cst_6 = arith.constant 1.562500e-02 : f32
    %10 = vector.broadcast %cst_6 : f32 to vector<8x1xf32>
    %11 = arith.mulf %7, %10 : vector<8x1xf32>
    %12 = arith.mulf %9, %9 : vector<8x1xf32>
    %13 = arith.subf %11, %12 : vector<8x1xf32>
    %cst_7 = arith.constant 0.000000e+00 : f32
    %14 = vector.broadcast %cst_7 : f32 to vector<8x1xf32>
    %15 = arith.maximumf %13, %14 : vector<8x1xf32>
    %16 = vector.broadcast %9 : vector<8x1xf32> to vector<8x128xf32>
    %17 = arith.subf %2, %16 : vector<8x128xf32>
    %cst_8 = arith.constant 9.99999974E-6 : f32
    %18 = vector.broadcast %cst_8 : f32 to vector<8x1xf32>
    %19 = arith.addf %15, %18 : vector<8x1xf32>
    %20 = math.rsqrt %19 : vector<8x1xf32>
    %21 = vector.broadcast %20 : vector<8x1xf32> to vector<8x128xf32>
    %22 = arith.mulf %17, %21 : vector<8x128xf32>
    %c0_9 = arith.constant 0 : index
    %c0_10 = arith.constant 0 : index
    %23 = vector.load %arg3[%c0_9, %c0_10] : memref<1x128xf32, #tpu.memory_space<vmem>>, vector<1x128xf32>
    %24 = vector.broadcast %23 : vector<1x128xf32> to vector<8x128xf32>
    %25 = arith.mulf %22, %24 : vector<8x128xf32>
    %c0_11 = arith.constant 0 : index
    %c0_12 = arith.constant 0 : index
    %26 = vector.load %arg4[%c0_11, %c0_12] : memref<1x128xf32, #tpu.memory_space<vmem>>, vector<1x128xf32>
    %27 = vector.broadcast %26 : vector<1x128xf32> to vector<8x128xf32>
    %28 = arith.addf %25, %27 : vector<8x128xf32>
    %cst_13 = arith.constant 0.000000e+00 : f32
    %29 = vector.broadcast %cst_13 : f32 to vector<8x128xf32>
    %30 = arith.maximumf %28, %29 : vector<8x128xf32>
    %c0_14 = arith.constant 0 : index
    %c0_15 = arith.constant 0 : index
    %31 = vector.load %arg5[%c0_14, %c0_15] : memref<128x128xf32, #tpu.memory_space<vmem>>, vector<128x128xf32>
    %cst_16 = arith.constant dense<0.000000e+00> : vector<8x128xf32>
    %32 = tpu.matmul %30, %31, %cst_16 {dimension_numbers = #tpu.dot_dimension_numbers<[1], [0], [0], [1], [0, 0, 1, 1], [], []>} : vector<8x128xf32>, vector<128x128xf32>, vector<8x128xf32> -> vector<8x128xf32>
    %c0_17 = arith.constant 0 : index
    %33 = memref.load %arg0[%c0_17] : memref<1xf32, #tpu.memory_space<smem>>
    %34 = vector.broadcast %33 : f32 to vector<8x128xf32>
    %35 = arith.addf %32, %34 : vector<8x128xf32>
    %36 = arith.negf %35 : vector<8x128xf32>
    %37 = math.exp %36 : vector<8x128xf32>
    %cst_18 = arith.constant 1.000000e+00 : f32
    %38 = vector.broadcast %cst_18 : f32 to vector<8x128xf32>
    %39 = arith.addf %38, %37 : vector<8x128xf32>
    %40 = arith.divf %38, %39 : vector<8x128xf32>
    %c0_19 = arith.constant 0 : index
    %c0_20 = arith.constant 0 : index
    %41 = vector.load %arg6[%c0_19, %c0_20] : memref<8x128xf32, #tpu.memory_space<vmem>>, vector<8x128xf32>
    tpu.vector_store %arg6[%c0_19, %c0_20], %40 {strides = array<i32>} : memref<8x128xf32, #tpu.memory_space<vmem>>, vector<8x128xf32>,
    return
  }
}

</mosaic_0001>

<llo_original>
// kernel: k_generator_forward.1
$region0: #{k_generator_forward.1}
  #allocation0 [shape = 'u32[]', space=smem, size = 0x4, offset = 0x4, fixed_abs, tag = 'smem constant byte address 0x4 - core index']
  #allocation1 [shape = 'u32[72,128]{1,0:T(1,128)}', space=vmem, size = 0x9000, scoped, tag = 'internal scratch']
  #allocation2 [shape = 'f32[1]{0:T(128)S(6)}', space=smem, size = 0x200, scoped, tag = 'scoped memory for k_generator_forward.1']
  %s0 = inlined_call_operand.<no memory space> [shape: f32[1], index: 0, kind: input, shape index: {}]
  %s1 = inlined_call_operand.vmem [shape: f32[8,32], index: 1, kind: input, shape index: {}]
  %s2 = inlined_call_operand.hbm [shape: f32[32,128], index: 2, kind: input, shape index: {}]
  %s3 = inlined_call_operand.vmem [shape: f32[1,128], index: 3, kind: input, shape index: {}]
  %s4 = inlined_call_operand.vmem [shape: f32[1,128], index: 4, kind: input, shape index: {}]
  %s5 = inlined_call_operand.hbm [shape: f32[128,128], index: 5, kind: input, shape index: {}]
  %s6 = inlined_call_operand.vmem [shape: f32[8,128], index: 6, kind: output, shape index: {}]
  %s7 = sld [smem:[#allocation0]]
  $region42: #{k_generator_forward.1} parent=0
    _
  %s9 = ssub.s32 1, %s7
  %s10 = scalar_select 0, %s9, %s7
  %11 = sst [smem:[#allocation2]] %s0
  $region1: #{k_generator_forward.1} parent=0
    #allocation3 [shape = 'u8[16384]{0}', space=vmem, size = 0x4000, scoped, tag = 'input window, operand 2, single buffered']
    #allocation4 [shape = 's32[1]{0}', space=sflag, size = 0x4, scoped, tag = 'scoped memory for k_generator_forward.1']
    #allocation5 [shape = 'u8[65536]{0}', space=vmem, size = 0x10000, scoped, tag = 'input window, operand 5, single buffered']
    #allocation6 [shape = 's32[1]{0}', space=sflag, size = 0x4, scoped, tag = 'scoped memory for k_generator_forward.1']
    %12 = vsyncpa [#allocation4], 0
    %13 = vsyncpa [#allocation6], 0
    // Predicated region
    $region2: #{k_generator_forward.1} parent=1 // pred_check
      _
    $region3: #{k_generator_forward.1} parent=1 // pred_check_branch
      %15 = sbr.rel (0) target = $region5
    $region4: #{k_generator_forward.1} parent=1 // pred_region
      _
    $region5: #{k_generator_forward.1} parent=1 // pred_fallthru
      _
    // Predicated region
    $region6: #{k_generator_forward.1} parent=1 // pred_check
      _
    $region7: #{k_generator_forward.1} parent=1 // pred_check_branch
      %17 = sbr.rel (0) target = $region9
    $region8: #{k_generator_forward.1} parent=1 // pred_region
      _
    $region9: #{k_generator_forward.1} parent=1 // pred_fallthru
      _
    // Predicated region
    $region10: #{k_generator_forward.1} parent=1 // pred_check
      _
    $region11: #{k_generator_forward.1} parent=1 // pred_check_branch
      %19 = sbr.rel (0) target = $region13
    $region12: #{k_generator_forward.1} parent=1 // pred_region
      %21 = vsyncadd [#allocation4], 0
      %s22 = sshll.u32 %s2, 4
      %s23 = int_to_ptr.hbm [resolvable:$true] %s22
      %s24 = sshll.u32 [#allocation3], 4
      %s25 = int_to_ptr.vmem [resolvable:$true] %s24
      %30 = dma.hbm_to_vmem [thread:$0]  %s23, 512, %s25, [#allocation4], 128, 128, 8
    $region13: #{k_generator_forward.1} parent=1 // pred_fallthru
      _
    // Predicated region
    $region14: #{k_generator_forward.1} parent=1 // pred_check
      _
    $region15: #{k_generator_forward.1} parent=1 // pred_check_branch
      %32 = sbr.rel (0) target = $region17
    $region16: #{k_generator_forward.1} parent=1 // pred_region
      _
    $region17: #{k_generator_forward.1} parent=1 // pred_fallthru
      _
    // Predicated region
    $region18: #{k_generator_forward.1} parent=1 // pred_check
      _
    $region19: #{k_generator_forward.1} parent=1 // pred_check_branch
      %34 = sbr.rel (0) target = $region21
    $region20: #{k_generator_forward.1} parent=1 // pred_region
      _
    $region21: #{k_generator_forward.1} parent=1 // pred_fallthru
      _
    // Predicated region
    $region22: #{k_generator_forward.1} parent=1 // pred_check
      _
    $region23: #{k_generator_forward.1} parent=1 // pred_check_branch
      %36 = sbr.rel (0) target = $region25
    $region24: #{k_generator_forward.1} parent=1 // pred_region
      %38 = vsyncadd [#allocation6], 0
      %s39 = sshll.u32 %s5, 4
      %s40 = int_to_ptr.hbm [resolvable:$true] %s39
      %s41 = sshll.u32 [#allocation5], 4
      %s42 = int_to_ptr.vmem [resolvable:$true] %s41
      %47 = dma.hbm_to_vmem [thread:$0]  %s40, 2048, %s42, [#allocation6], 128, 128, 8
    $region25: #{k_generator_forward.1} parent=1 // pred_fallthru
      _
    // Predicated region
    $region26: #{k_generator_forward.1} parent=1 // pred_check
      _
    $region27: #{k_generator_forward.1} parent=1 // pred_check_branch
      %49 = sbr.rel (0) target = $region29
    $region28: #{k_generator_forward.1} parent=1 // pred_region
      %51 = dma.done [#allocation4], 512
    $region29: #{k_generator_forward.1} parent=1 // pred_fallthru
      _
    // Predicated region
    $region30: #{k_generator_forward.1} parent=1 // pred_check
      _
    $region31: #{k_generator_forward.1} parent=1 // pred_check_branch
      %53 = sbr.rel (0) target = $region33
    $region32: #{k_generator_forward.1} parent=1 // pred_region
      %55 = dma.done [#allocation6], 2048
    $region33: #{k_generator_forward.1} parent=1 // pred_fallthru
      _
    %v56 = vld [vmem:[%s1] sm:$0xff]
    %v57 = vld [vmem:[#allocation3] sm:$0xff]
    %v58 = vld [vmem:[#allocation3 + $0x8] sm:$0xff]
    %v59 = vld [vmem:[#allocation3 + $0x10] sm:$0xff]
    %v60 = vld [vmem:[#allocation3 + $0x18] sm:$0xff]
    %vm61 = vcmask 261120
    %v63 = vsel %vm61, %v56, 0
    %65 = vmatpush.msra.mxu0 0.0
    %66 = vmatpush.msra.mxu0 0.0
    %67 = vmatpush.msra.mxu0 0.0
    %68 = vmatpush.msra.mxu0 0.0
    %69 = vmatpush.msra.mxu0 0.0
    %70 = vmatpush.msra.mxu0 0.0
    %71 = vmatpush.msra.mxu0 0.0
    %72 = vmatpush.msra.mxu0 0.0
    %73 = vmatpush.msra.mxu0 0.0
    %74 = vmatpush.msra.mxu0 0.0
    %75 = vmatpush.msra.mxu0 0.0
    %76 = vmatpush.msra.mxu0 0.0
    %77 = vmatpush.msra.mxu0 %v60
    %78 = vmatpush.msra.mxu0 %v59
    %79 = vmatpush.msra.mxu0 %v58
    %80 = vmatpush.msra.mxu0 %v57
    %81 = vmatmul.f32.gmra.mxu0 %v63
    %v82 = vpop.f32.mrf.mxu0
    %v83 = vadd.f32 0.0, %v82
    %84 = vdwg.mxu0
    %85 = vadd.xlane.f32.xlu0 %v83
    %v86 = vpop.xlane.xlu0 %85
    %v87 = vmul.f32 %v83, %v83
    %88 = vadd.xlane.f32.xlu0 %v87
    %v89 = vpop.xlane.xlu0 %88
    %v90 = vmul.f32 %v86, 0.015625
    %v91 = vmul.f32 %v89, 0.015625
    %v92 = vmul.f32 %v90, %v90
    %v93 = vsub.f32 %v91, %v92
    %v94 = vmax.f32 %v93, 0.0
    %v95 = vsub.f32 %v83, %v90
    %v96 = vadd.f32 %v94, 1e-05
    %v97 = vrsqrt.pop %v96
    %v98 = vmul.f32 %v97, %v96
    %v99 = vmul.f32 %v98, %v97
    %v100 = vmul.f32 0.5, %v99
    %v101 = vsub.f32 1.5, %v100
    %v102 = vmul.f32 %v97, %v101
    %vm103 = vweird.f32 %v96
    %vm104 = vweird.f32 %v97
    %vm105 = vmor %vm103, %vm104
    %v106 = vsel %vm105, %v97, %v102
    %v107 = vmul.f32 %v95, %v106
    %v108 = vld [vmem:[%s3] sm:$0x1]
    %v110 = vperm.slane %v108, 0
    %v112 = vmul.f32 %v107, %v110
    %v113 = vld [vmem:[%s4] sm:$0x1]
    %v115 = vperm.slane %v113, 0
    %v117 = vadd.f32 %v112, %v115
    %v118 = vmax.f32 %v117, 0.0
    %v119 = vld [vmem:[#allocation5] sm:$0xff]
    %v120 = vld [vmem:[#allocation5 + $0x8] sm:$0xff]
    %v121 = vld [vmem:[#allocation5 + $0x10] sm:$0xff]
    %v122 = vld [vmem:[#allocation5 + $0x18] sm:$0xff]
    %v123 = vld [vmem:[#allocation5 + $0x20] sm:$0xff]
    %v124 = vld [vmem:[#allocation5 + $0x28] sm:$0xff]
    %v125 = vld [vmem:[#allocation5 + $0x30] sm:$0xff]
    %v126 = vld [vmem:[#allocation5 + $0x38] sm:$0xff]
    %v127 = vld [vmem:[#allocation5 + $0x40] sm:$0xff]
    %v128 = vld [vmem:[#allocation5 + $0x48] sm:$0xff]
    %v129 = vld [vmem:[#allocation5 + $0x50] sm:$0xff]
    %v130 = vld [vmem:[#allocation5 + $0x58] sm:$0xff]
    %v131 = vld [vmem:[#allocation5 + $0x60] sm:$0xff]
    %v132 = vld [vmem:[#allocation5 + $0x68] sm:$0xff]
    %v133 = vld [vmem:[#allocation5 + $0x70] sm:$0xff]
    %v134 = vld [vmem:[#allocation5 + $0x78] sm:$0xff]
    %s135 = sld [smem:[#allocation2]]
    %v136 = vstv %s135
    %137 = vmatpush.msra.mxu0 %v134
    %138 = vmatpush.msra.mxu0 %v133
    %139 = vmatpush.msra.mxu0 %v132
    %140 = vmatpush.msra.mxu0 %v131
    %141 = vmatpush.msra.mxu0 %v130
    %142 = vmatpush.msra.mxu0 %v129
    %143 = vmatpush.msra.mxu0 %v128
    %144 = vmatpush.msra.mxu0 %v127
    %145 = vmatpush.msra.mxu0 %v126
    %146 = vmatpush.msra.mxu0 %v125
    %147 = vmatpush.msra.mxu0 %v124
    %148 = vmatpush.msra.mxu0 %v123
    %149 = vmatpush.msra.mxu0 %v122
    %150 = vmatpush.msra.mxu0 %v121
    %151 = vmatpush.msra.mxu0 %v120
    %152 = vmatpush.msra.mxu0 %v119
    %153 = vmatmul.f32.gmra.mxu0 %v118
    %v154 = vpop.f32.mrf.mxu0
    %v155 = vadd.f32 %v136, %v154
    %156 = vdwg.mxu0
    %v157 = vxor.u32 %v155, 2147483648
    %v158 = vmul.f32 %v157, 1.442695
    %v159 = vpow.pop %v158
    %v160 = vadd.f32 %v159, 1.0
    %v161 = vrcp.pop %v160
    %v162 = vmul.f32 %v160, %v161
    %v163 = vsub.f32 1.0, %v162
    %v164 = vmul.f32 %v161, %v163
    %v165 = vadd.f32 %v161, %v164
    %vm166 = vweird.f32 %v160
    %vm167 = vweird.f32 %v161
    %vm168 = vmor %vm166, %vm167
    %v169 = vsel %vm168, %v161, %v165
    %v170 = vand.u32 2147483647, %v160
    %vm171 = vcmp.eq.f32.partialorder %v170, 8.507059e+37
    %v172 = vand.u32 %v160, 2147483648
    %v173 = vor.u32 1.1754944e-38, %v172
    %v174 = vsel %vm171, %v173, %v169
    %v175 = vmul.f32 1.0, %v174
    %176 = vst [vmem:[%s6] sm:$0xff] %v175
    // Predicated region
    $region34: #{k_generator_forward.1} parent=1 // pred_check
      _
    $region35: #{k_generator_forward.1} parent=1 // pred_check_branch
      %178 = sbr.rel (0) target = $region37
    $region36: #{k_generator_forward.1} parent=1 // pred_region
      _
    $region37: #{k_generator_forward.1} parent=1 // pred_fallthru
      _
    // Predicated region
    $region38: #{k_generator_forward.1} parent=1 // pred_check
      _
    $region39: #{k_generator_forward.1} parent=1 // pred_check_branch
      %180 = sbr.rel (0) target = $region41
    $region40: #{k_generator_forward.1} parent=1 // pred_region
      _
    $region41: #{k_generator_forward.1} parent=1 // pred_fallthru
      _
    %181 = vsyncpa [#allocation4], 1
    %182 = vsyncpa [#allocation6], 1

</llo_original>
